<compile_context>
chip_gen: v7x
topology: tpu7x:2x2x1
jax: 0.10.0
libtpu: 0.0.40
codegen_flags: <defaults>
</compile_context>

<pallas_src>
import functools

import numpy as np
import jax
import jax.numpy as jnp
from jax.experimental import pallas as pl
from jax.experimental.pallas import tpu as pltpu


# --------------------------------- fused kernel ----------------------------------

def _tcn_fused_kernel(x0_ref, xrep_ref, *rest, shifts_per_layer, num_layers, Bp):
    L = num_layers
    w_refs = rest[:2 * L]                                 # per (layer, conv) block-diag weights
    aff_ref, ds_ref, fcw_ref, fcb_ref, o_ref = rest[2 * L:]

    R, CP = x0_ref.shape                                  # R = T*Bp rows, CP = 128 lanes

    def shifted(h, s):
        # Causal time shift by s steps.  Time is the sublane-major axis (row = t*Bp + b),
        # so this is an 8-aligned sublane copy with zero fill -- no MXU, no mask, and
        # batches never mix (same b stays in the same row-within-group).
        if s == 0:
            return h
        return jnp.concatenate(
            [jnp.zeros((s * Bp, CP), jnp.float32), h[:R - s * Bp, :]], axis=0)

    def causal_conv(h, w, shifts, bias_b):
        # im2col on the lane axis: each tap block is a full 128-lane tile, so the concat
        # is tile-aligned layout plumbing; one MXU dot per conv (Conv1d + Chomp1d fused).
        taps = [shifted(h, s) for s in shifts]
        stacked = taps[0] if len(taps) == 1 else jnp.concatenate(taps, axis=1)
        return jnp.dot(stacked, w, preferred_element_type=jnp.float32) + bias_b

    h = x0_ref[...]                                       # (R, CP); lane f = signal f
    for l in range(L):                                    # L is tiny & static -> unrolled
        shifts = shifts_per_layer[l]
        # conv1 -> chomp -> tanh -> dropout(id) -> batchnorm(eval, folded)
        z = causal_conv(h, w_refs[2 * l][...], shifts, aff_ref[l, 0, 0])
        z = jnp.tanh(z) * aff_ref[l, 0, 1] + aff_ref[l, 0, 2]
        # conv2 -> chomp -> tanh -> dropout(id) -> batchnorm(eval, folded)
        z = causal_conv(z, w_refs[2 * l + 1][...], shifts, aff_ref[l, 1, 0])
        z = jnp.tanh(z) * aff_ref[l, 1, 1] + aff_ref[l, 1, 2]
        if l == 0:
            # real 1x1 downsample (cin=1 != cout): VPU multiply-add, no matmul
            res = ds_ref[0] * xrep_ref[...] + ds_ref[1]
        else:
            res = h                                       # identity residual
        h = jnp.tanh(z + res)                             # (R, CP)

    # fc head on the last-timestep rows only: 8-aligned sublane slice (no gather matmul),
    # ReLU -> dropout(id) -> single Linear dot over all stacked features.
    h_last = h[R - Bp:, :]                                # (Bp, CP)
    o_ref[...] = jnp.dot(jnp.maximum(h_last, 0.0), fcw_ref[...],
                         preferred_element_type=jnp.float32) + fcb_ref[...]


# ------------------------------------ forward ------------------------------------

def tcn_forward(x, packed):
    """x: (B, num_features, T) float32 with T == num_features (PyTorch indexing req.)."""
    m = packed["meta"]
    F, L, H, T, Bp, CP, out = m["F"], m["L"], m["H"], m["T"], m["Bp"], m["CP"], m["out"]
    B = x.shape[0]
    assert x.shape == (B, F, T) and T == F, "PyTorch forward requires x.size(1)==x.size(2)"

    # layout plumbing (XLA, one-time): time-major rows (row = t*Bp + b), channels on lanes.
    xt = jnp.transpose(x, (2, 0, 1))                       # (T, B, F)
    xt = jnp.pad(xt, ((0, 0), (0, Bp - B), (0, 0)))        # (T, Bp, F)
    xt = xt.reshape(T * Bp, F)
    x0 = jnp.pad(xt, ((0, 0), (0, CP - F)))                # (R, CP); lane f = signal f
    xrep = jnp.pad(jnp.repeat(xt, H, axis=1),
                   ((0, 0), (0, CP - F * H)))              # (R, CP); lane f*H+c = signal f

    kernel = functools.partial(_tcn_fused_kernel,
                               shifts_per_layer=packed["shifts"],
                               num_layers=L, Bp=Bp)
    vmem = pl.BlockSpec(memory_space=pltpu.MemorySpace.VMEM)
    inputs = (x0, xrep) + packed["conv_ws"] + (packed["aff"], packed["ds"],
                                               packed["fc_wT"], packed["fc_bb"])
    y = pl.pallas_call(
        kernel,
        out_shape=jax.ShapeDtypeStruct((Bp, out), jnp.float32),
        in_specs=[vmem] * len(inputs),
        out_specs=vmem,
    )(*inputs)
    return y[:B]                                           # (B, output_size)


# --------------------------------- parameter init --------------------------------

def init_tcn_params(key, *, num_features, num_layers, hidden_dim, kernel_sizes,
                    output_size):
    """Random 'PyTorch-like' params (weight_norm folded; BN eval stats folded)."""
    eps = 1e-5
    F, L, H = num_features, num_layers, hidden_dim

    def bn_fold(kk):
        ka, kb, kc, kd = jax.random.split(kk, 4)
        gamma = 1.0 + 0.1 * jax.random.normal(ka, (H,), jnp.float32)
        beta = 0.1 * jax.random.normal(kb, (H,), jnp.float32)
        mean = 0.1 * jax.random.normal(kc, (H,), jnp.float32)
        var = 0.5 + jnp.abs(jax.random.normal(kd, (H,), jnp.float32))
        scale = gamma / jnp.sqrt(var + eps)
        return scale, beta - mean * scale

    conv_w, conv_b, bn_s, bn_t, ds_w, ds_b = [], [], [], [], [], []
    for f in range(F):
        K = kernel_sizes[f]
        cw_f, cb_f, s_f, t_f = [], [], [], []
        for l in range(L):
            cin = 1 if l == 0 else H
            key, k1, k2, k3, k4, k5, k6 = jax.random.split(key, 7)
            w1 = 0.2 * jax.random.normal(k1, (H, cin, K), jnp.float32)
            b1 = 0.05 * jax.random.normal(k2, (H,), jnp.float32)
            w2 = 0.2 * jax.random.normal(k3, (H, H, K), jnp.float32)
            b2 = 0.05 * jax.random.normal(k4, (H,), jnp.float32)
            s1, t1 = bn_fold(k5)
            s2, t2 = bn_fold(k6)
            cw_f.append((w1, w2)); cb_f.append((b1, b2))
            s_f.append((s1, s2)); t_f.append((t1, t2))
        key, kd1, kd2 = jax.random.split(key, 3)
        ds_w.append(0.2 * jax.random.normal(kd1, (H,), jnp.float32))   # Conv1d(1,H,1)
        ds_b.append(0.05 * jax.random.normal(kd2, (H,), jnp.float32))
        conv_w.append(cw_f); conv_b.append(cb_f); bn_s.append(s_f); bn_t.append(t_f)

    key, kw, kb = jax.random.split(key, 3)
    fc_w = 0.1 * jax.random.normal(kw, (output_size, F * H), jnp.float32)
    fc_b = 0.05 * jax.random.normal(kb, (output_size,), jnp.float32)

    return dict(conv_w=conv_w, conv_b=conv_b, bn_s=bn_s, bn_t=bn_t,
                ds_w=ds_w, ds_b=ds_b, fc_w=fc_w, fc_b=fc_b,
                ksizes=tuple(kernel_sizes), num_layers=L, hidden=H,
                num_features=F, output_size=output_size)


def pack_tcn_params(raw, *, seq_len, batch):
    """Repack raw params into the kernel layout: time-major rows, 128-lane channel tile,
    block-diagonal per-layer conv weights with statically dropped (shift >= T) taps,
    and pre-broadcast lane-major per-channel vectors."""
    F, L, H = raw["num_features"], raw["num_layers"], raw["hidden"]
    Ks = raw["ksizes"]; Kmax = max(Ks); out = raw["output_size"]
    T = seq_len
    Bp = max(8, ((batch + 7) // 8) * 8)          # batch padded to a sublane multiple
    R = T * Bp
    CP = 128                                     # channel lanes padded to one full tile
    assert F * H <= CP

    shifts_per_layer, conv_ws = [], []
    aff = np.zeros((L, 2, 3, R, CP), np.float32)           # [l, conv, {bias,scale,shift}]
    for l in range(L):
        d = 2 ** l
        shifts = tuple(s for s in ((Kmax - 1 - kt) * d for kt in range(Kmax)) if s < T)
        shifts_per_layer.append(shifts)
        for ci in range(2):
            cin = 1 if (l == 0 and ci == 0) else H
            W = np.zeros((len(shifts) * CP, CP), np.float32)
            for f in range(F):
                Kf = Ks[f]
                wt = np.asarray(raw["conv_w"][f][l][ci])    # (H, cin, Kf)
                for kp in range(Kf):
                    s = (Kf - 1 - kp) * d
                    if s >= T:
                        continue                             # statically dropped tap
                    j = shifts.index(s)
                    for c in range(cin):
                        in_lane = f if cin == 1 else f * H + c
                        W[j * CP + in_lane, f * H:(f + 1) * H] = wt[:, c, kp]
                aff[l, ci, 0, :, f * H:(f + 1) * H] = np.asarray(raw["conv_b"][f][l][ci])[None, :]
                aff[l, ci, 1, :, f * H:(f + 1) * H] = np.asarray(raw["bn_s"][f][l][ci])[None, :]
                aff[l, ci, 2, :, f * H:(f + 1) * H] = np.asarray(raw["bn_t"][f][l][ci])[None, :]
            conv_ws.append(jnp.asarray(W))

    ds = np.zeros((2, R, CP), np.float32)                    # layer-0 downsample w, b
    for f in range(F):
        ds[0, :, f * H:(f + 1) * H] = np.asarray(raw["ds_w"][f])[None, :]
        ds[1, :, f * H:(f + 1) * H] = np.asarray(raw["ds_b"][f])[None, :]

    fc_wT = np.zeros((CP, out), np.float32)
    fc_wT[:F * H, :] = np.asarray(raw["fc_w"]).T
    fc_bb = np.broadcast_to(np.asarray(raw["fc_b"])[None, :], (Bp, out)).copy()

    return dict(conv_ws=tuple(conv_ws), aff=jnp.asarray(aff), ds=jnp.asarray(ds),
                fc_wT=jnp.asarray(fc_wT), fc_bb=jnp.asarray(fc_bb),
                shifts=tuple(shifts_per_layer),
                meta=dict(F=F, L=L, H=H, T=T, Bp=Bp, CP=CP, out=out))


if __name__ == "__main__":
    num_features = 4
    num_layers = 2
    hidden_dim = 16
    kernel_sizes = [3, 3, 3, 3]
    output_size = 2

    B = 2
    F = T = num_features            # the PyTorch forward requires x.size(1) == x.size(2)

    key = jax.random.PRNGKey(0)
    kx, kp = jax.random.split(key)
    x = jax.random.normal(kx, (B, F, T), jnp.float32)
    raw = init_tcn_params(kp, num_features=num_features, num_layers=num_layers,
                          hidden_dim=hidden_dim, kernel_sizes=kernel_sizes,
                          output_size=output_size)
    packed = pack_tcn_params(raw, seq_len=T, batch=B)

    out = tcn_forward(x, packed)
    out = jax.block_until_ready(out)
    assert out.shape == (B, output_size), out.shape
    assert bool(jnp.all(jnp.isfinite(out)))
    print("KERNEL_OK")
</pallas_src>

<mosaic_0001>
module attributes {stable_mosaic.version = 11 : i64} {
  func.func @_tcn_fused_kernel(%arg0: memref<32x128xf32, #tpu.memory_space<vmem>>, %arg1: memref<32x128xf32, #tpu.memory_space<vmem>>, %arg2: memref<384x128xf32, #tpu.memory_space<vmem>>, %arg3: memref<384x128xf32, #tpu.memory_space<vmem>>, %arg4: memref<256x128xf32, #tpu.memory_space<vmem>>, %arg5: memref<256x128xf32, #tpu.memory_space<vmem>>, %arg6: memref<2x2x3x32x128xf32, #tpu.memory_space<vmem>>, %arg7: memref<2x32x128xf32, #tpu.memory_space<vmem>>, %arg8: memref<128x2xf32, #tpu.memory_space<vmem>>, %arg9: memref<8x2xf32, #tpu.memory_space<vmem>>, %arg10: memref<8x2xf32, #tpu.memory_space<vmem>>) attributes {dimension_semantics = [], scalar_prefetch = 0 : i64, scratch_operands = 0 : i64, tpu.core_type = #tpu.core_type<tc>} {
    %c0 = arith.constant 0 : index
    %c0_0 = arith.constant 0 : index
    %0 = vector.load %arg0[%c0, %c0_0] : memref<32x128xf32, #tpu.memory_space<vmem>>, vector<32x128xf32>
    %c0_1 = arith.constant 0 : index
    %c0_2 = arith.constant 0 : index
    %1 = vector.load %arg2[%c0_1, %c0_2] : memref<384x128xf32, #tpu.memory_space<vmem>>, vector<384x128xf32>
    %c0_3 = arith.constant 0 : index
    %c0_4 = arith.constant 0 : index
    %c0_5 = arith.constant 0 : index
    %c0_6 = arith.constant 0 : index
    %c0_7 = arith.constant 0 : index
    %2 = vector.load %arg6[%c0_3, %c0_4, %c0_5, %c0_6, %c0_7] : memref<2x2x3x32x128xf32, #tpu.memory_space<vmem>>, vector<1x1x1x32x128xf32>
    %3 = vector.shape_cast %2 : vector<1x1x1x32x128xf32> to vector<32x128xf32>
    %cst = arith.constant 0.000000e+00 : f32
    %4 = vector.broadcast %cst : f32 to vector<16x128xf32>
    %5 = vector.extract_strided_slice %0 {offsets = [0, 0], sizes = [16, 128], strides = [1, 1]} : vector<32x128xf32> to vector<16x128xf32>
    %6 = tpu.concatenate %4, %5 in 0 : vector<16x128xf32>, vector<16x128xf32> -> vector<32x128xf32>
    %cst_8 = arith.constant 0.000000e+00 : f32
    %7 = vector.broadcast %cst_8 : f32 to vector<8x128xf32>
    %8 = vector.extract_strided_slice %0 {offsets = [0, 0], sizes = [24, 128], strides = [1, 1]} : vector<32x128xf32> to vector<24x128xf32>
    %9 = tpu.concatenate %7, %8 in 0 : vector<8x128xf32>, vector<24x128xf32> -> vector<32x128xf32>
    %10 = tpu.concatenate %6, %9, %0 in 1 : vector<32x128xf32>, vector<32x128xf32>, vector<32x128xf32> -> vector<32x384xf32>
    %cst_9 = arith.constant dense<0.000000e+00> : vector<32x128xf32>
    %11 = tpu.matmul %10, %1, %cst_9 {dimension_numbers = #tpu.dot_dimension_numbers<[1], [0], [0], [1], [0, 0, 1, 1], [], []>} : vector<32x384xf32>, vector<384x128xf32>, vector<32x128xf32> -> vector<32x128xf32>
    %12 = arith.addf %11, %3 : vector<32x128xf32>
    %13 = math.tanh %12 : vector<32x128xf32>
    %c0_10 = arith.constant 0 : index
    %c0_11 = arith.constant 0 : index
    %c1 = arith.constant 1 : index
    %c0_12 = arith.constant 0 : index
    %c0_13 = arith.constant 0 : index
    %14 = vector.load %arg6[%c0_10, %c0_11, %c1, %c0_12, %c0_13] : memref<2x2x3x32x128xf32, #tpu.memory_space<vmem>>, vector<1x1x1x32x128xf32>
    %15 = vector.shape_cast %14 : vector<1x1x1x32x128xf32> to vector<32x128xf32>
    %16 = arith.mulf %13, %15 : vector<32x128xf32>
    %c0_14 = arith.constant 0 : index
    %c0_15 = arith.constant 0 : index
    %c2 = arith.constant 2 : index
    %c0_16 = arith.constant 0 : index
    %c0_17 = arith.constant 0 : index
    %17 = vector.load %arg6[%c0_14, %c0_15, %c2, %c0_16, %c0_17] : memref<2x2x3x32x128xf32, #tpu.memory_space<vmem>>, vector<1x1x1x32x128xf32>
    %18 = vector.shape_cast %17 : vector<1x1x1x32x128xf32> to vector<32x128xf32>
    %19 = arith.addf %16, %18 : vector<32x128xf32>
    %c0_18 = arith.constant 0 : index
    %c0_19 = arith.constant 0 : index
    %20 = vector.load %arg3[%c0_18, %c0_19] : memref<384x128xf32, #tpu.memory_space<vmem>>, vector<384x128xf32>
    %c0_20 = arith.constant 0 : index
    %c1_21 = arith.constant 1 : index
    %c0_22 = arith.constant 0 : index
    %c0_23 = arith.constant 0 : index
    %c0_24 = arith.constant 0 : index
    %21 = vector.load %arg6[%c0_20, %c1_21, %c0_22, %c0_23, %c0_24] : memref<2x2x3x32x128xf32, #tpu.memory_space<vmem>>, vector<1x1x1x32x128xf32>
    %22 = vector.shape_cast %21 : vector<1x1x1x32x128xf32> to vector<32x128xf32>
    %cst_25 = arith.constant 0.000000e+00 : f32
    %23 = vector.broadcast %cst_25 : f32 to vector<16x128xf32>
    %24 = vector.extract_strided_slice %19 {offsets = [0, 0], sizes = [16, 128], strides = [1, 1]} : vector<32x128xf32> to vector<16x128xf32>
    %25 = tpu.concatenate %23, %24 in 0 : vector<16x128xf32>, vector<16x128xf32> -> vector<32x128xf32>
    %cst_26 = arith.constant 0.000000e+00 : f32
    %26 = vector.broadcast %cst_26 : f32 to vector<8x128xf32>
    %27 = vector.extract_strided_slice %19 {offsets = [0, 0], sizes = [24, 128], strides = [1, 1]} : vector<32x128xf32> to vector<24x128xf32>
    %28 = tpu.concatenate %26, %27 in 0 : vector<8x128xf32>, vector<24x128xf32> -> vector<32x128xf32>
    %29 = tpu.concatenate %25, %28, %19 in 1 : vector<32x128xf32>, vector<32x128xf32>, vector<32x128xf32> -> vector<32x384xf32>
    %cst_27 = arith.constant dense<0.000000e+00> : vector<32x128xf32>
    %30 = tpu.matmul %29, %20, %cst_27 {dimension_numbers = #tpu.dot_dimension_numbers<[1], [0], [0], [1], [0, 0, 1, 1], [], []>} : vector<32x384xf32>, vector<384x128xf32>, vector<32x128xf32> -> vector<32x128xf32>
    %31 = arith.addf %30, %22 : vector<32x128xf32>
    %32 = math.tanh %31 : vector<32x128xf32>
    %c0_28 = arith.constant 0 : index
    %c1_29 = arith.constant 1 : index
    %c1_30 = arith.constant 1 : index
    %c0_31 = arith.constant 0 : index
    %c0_32 = arith.constant 0 : index
    %33 = vector.load %arg6[%c0_28, %c1_29, %c1_30, %c0_31, %c0_32] : memref<2x2x3x32x128xf32, #tpu.memory_space<vmem>>, vector<1x1x1x32x128xf32>
    %34 = vector.shape_cast %33 : vector<1x1x1x32x128xf32> to vector<32x128xf32>
    %35 = arith.mulf %32, %34 : vector<32x128xf32>
    %c0_33 = arith.constant 0 : index
    %c1_34 = arith.constant 1 : index
    %c2_35 = arith.constant 2 : index
    %c0_36 = arith.constant 0 : index
    %c0_37 = arith.constant 0 : index
    %36 = vector.load %arg6[%c0_33, %c1_34, %c2_35, %c0_36, %c0_37] : memref<2x2x3x32x128xf32, #tpu.memory_space<vmem>>, vector<1x1x1x32x128xf32>
    %37 = vector.shape_cast %36 : vector<1x1x1x32x128xf32> to vector<32x128xf32>
    %38 = arith.addf %35, %37 : vector<32x128xf32>
    %c0_38 = arith.constant 0 : index
    %c0_39 = arith.constant 0 : index
    %c0_40 = arith.constant 0 : index
    %39 = vector.load %arg7[%c0_38, %c0_39, %c0_40] : memref<2x32x128xf32, #tpu.memory_space<vmem>>, vector<1x32x128xf32>
    %40 = vector.shape_cast %39 : vector<1x32x128xf32> to vector<32x128xf32>
    %c0_41 = arith.constant 0 : index
    %c0_42 = arith.constant 0 : index
    %41 = vector.load %arg1[%c0_41, %c0_42] : memref<32x128xf32, #tpu.memory_space<vmem>>, vector<32x128xf32>
    %42 = arith.mulf %40, %41 : vector<32x128xf32>
    %c1_43 = arith.constant 1 : index
    %c0_44 = arith.constant 0 : index
    %c0_45 = arith.constant 0 : index
    %43 = vector.load %arg7[%c1_43, %c0_44, %c0_45] : memref<2x32x128xf32, #tpu.memory_space<vmem>>, vector<1x32x128xf32>
    %44 = vector.shape_cast %43 : vector<1x32x128xf32> to vector<32x128xf32>
    %45 = arith.addf %42, %44 : vector<32x128xf32>
    %46 = arith.addf %38, %45 : vector<32x128xf32>
    %47 = math.tanh %46 : vector<32x128xf32>
    %c0_46 = arith.constant 0 : index
    %c0_47 = arith.constant 0 : index
    %48 = vector.load %arg4[%c0_46, %c0_47] : memref<256x128xf32, #tpu.memory_space<vmem>>, vector<256x128xf32>
    %c1_48 = arith.constant 1 : index
    %c0_49 = arith.constant 0 : index
    %c0_50 = arith.constant 0 : index
    %c0_51 = arith.constant 0 : index
    %c0_52 = arith.constant 0 : index
    %49 = vector.load %arg6[%c1_48, %c0_49, %c0_50, %c0_51, %c0_52] : memref<2x2x3x32x128xf32, #tpu.memory_space<vmem>>, vector<1x1x1x32x128xf32>
    %50 = vector.shape_cast %49 : vector<1x1x1x32x128xf32> to vector<32x128xf32>
    %cst_53 = arith.constant 0.000000e+00 : f32
    %51 = vector.broadcast %cst_53 : f32 to vector<16x128xf32>
    %52 = vector.extract_strided_slice %47 {offsets = [0, 0], sizes = [16, 128], strides = [1, 1]} : vector<32x128xf32> to vector<16x128xf32>
    %53 = tpu.concatenate %51, %52 in 0 : vector<16x128xf32>, vector<16x128xf32> -> vector<32x128xf32>
    %54 = tpu.concatenate %53, %47 in 1 : vector<32x128xf32>, vector<32x128xf32> -> vector<32x256xf32>
    %cst_54 = arith.constant dense<0.000000e+00> : vector<32x128xf32>
    %55 = tpu.matmul %54, %48, %cst_54 {dimension_numbers = #tpu.dot_dimension_numbers<[1], [0], [0], [1], [0, 0, 1, 1], [], []>} : vector<32x256xf32>, vector<256x128xf32>, vector<32x128xf32> -> vector<32x128xf32>
    %56 = arith.addf %55, %50 : vector<32x128xf32>
    %57 = math.tanh %56 : vector<32x128xf32>
    %c1_55 = arith.constant 1 : index
    %c0_56 = arith.constant 0 : index
    %c1_57 = arith.constant 1 : index
    %c0_58 = arith.constant 0 : index
    %c0_59 = arith.constant 0 : index
    %58 = vector.load %arg6[%c1_55, %c0_56, %c1_57, %c0_58, %c0_59] : memref<2x2x3x32x128xf32, #tpu.memory_space<vmem>>, vector<1x1x1x32x128xf32>
    %59 = vector.shape_cast %58 : vector<1x1x1x32x128xf32> to vector<32x128xf32>
    %60 = arith.mulf %57, %59 : vector<32x128xf32>
    %c1_60 = arith.constant 1 : index
    %c0_61 = arith.constant 0 : index
    %c2_62 = arith.constant 2 : index
    %c0_63 = arith.constant 0 : index
    %c0_64 = arith.constant 0 : index
    %61 = vector.load %arg6[%c1_60, %c0_61, %c2_62, %c0_63, %c0_64] : memref<2x2x3x32x128xf32, #tpu.memory_space<vmem>>, vector<1x1x1x32x128xf32>
    %62 = vector.shape_cast %61 : vector<1x1x1x32x128xf32> to vector<32x128xf32>
    %63 = arith.addf %60, %62 : vector<32x128xf32>
    %c0_65 = arith.constant 0 : index
    %c0_66 = arith.constant 0 : index
    %64 = vector.load %arg5[%c0_65, %c0_66] : memref<256x128xf32, #tpu.memory_space<vmem>>, vector<256x128xf32>
    %c1_67 = arith.constant 1 : index
    %c1_68 = arith.constant 1 : index
    %c0_69 = arith.constant 0 : index
    %c0_70 = arith.constant 0 : index
    %c0_71 = arith.constant 0 : index
    %65 = vector.load %arg6[%c1_67, %c1_68, %c0_69, %c0_70, %c0_71] : memref<2x2x3x32x128xf32, #tpu.memory_space<vmem>>, vector<1x1x1x32x128xf32>
    %66 = vector.shape_cast %65 : vector<1x1x1x32x128xf32> to vector<32x128xf32>
    %cst_72 = arith.constant 0.000000e+00 : f32
    %67 = vector.broadcast %cst_72 : f32 to vector<16x128xf32>
    %68 = vector.extract_strided_slice %63 {offsets = [0, 0], sizes = [16, 128], strides = [1, 1]} : vector<32x128xf32> to vector<16x128xf32>
    %69 = tpu.concatenate %67, %68 in 0 : vector<16x128xf32>, vector<16x128xf32> -> vector<32x128xf32>
    %70 = tpu.concatenate %69, %63 in 1 : vector<32x128xf32>, vector<32x128xf32> -> vector<32x256xf32>
    %cst_73 = arith.constant dense<0.000000e+00> : vector<32x128xf32>
    %71 = tpu.matmul %70, %64, %cst_73 {dimension_numbers = #tpu.dot_dimension_numbers<[1], [0], [0], [1], [0, 0, 1, 1], [], []>} : vector<32x256xf32>, vector<256x128xf32>, vector<32x128xf32> -> vector<32x128xf32>
    %72 = arith.addf %71, %66 : vector<32x128xf32>
    %73 = math.tanh %72 : vector<32x128xf32>
    %c1_74 = arith.constant 1 : index
    %c1_75 = arith.constant 1 : index
    %c1_76 = arith.constant 1 : index
    %c0_77 = arith.constant 0 : index
    %c0_78 = arith.constant 0 : index
    %74 = vector.load %arg6[%c1_74, %c1_75, %c1_76, %c0_77, %c0_78] : memref<2x2x3x32x128xf32, #tpu.memory_space<vmem>>, vector<1x1x1x32x128xf32>
    %75 = vector.shape_cast %74 : vector<1x1x1x32x128xf32> to vector<32x128xf32>
    %76 = arith.mulf %73, %75 : vector<32x128xf32>
    %c1_79 = arith.constant 1 : index
    %c1_80 = arith.constant 1 : index
    %c2_81 = arith.constant 2 : index
    %c0_82 = arith.constant 0 : index
    %c0_83 = arith.constant 0 : index
    %77 = vector.load %arg6[%c1_79, %c1_80, %c2_81, %c0_82, %c0_83] : memref<2x2x3x32x128xf32, #tpu.memory_space<vmem>>, vector<1x1x1x32x128xf32>
    %78 = vector.shape_cast %77 : vector<1x1x1x32x128xf32> to vector<32x128xf32>
    %79 = arith.addf %76, %78 : vector<32x128xf32>
    %80 = arith.addf %79, %47 : vector<32x128xf32>
    %81 = math.tanh %80 : vector<32x128xf32>
    %82 = vector.extract_strided_slice %81 {offsets = [24, 0], sizes = [8, 128], strides = [1, 1]} : vector<32x128xf32> to vector<8x128xf32>
    %cst_84 = arith.constant 0.000000e+00 : f32
    %83 = vector.broadcast %cst_84 : f32 to vector<8x128xf32>
    %84 = arith.maximumf %82, %83 : vector<8x128xf32>
    %c0_85 = arith.constant 0 : index
    %c0_86 = arith.constant 0 : index
    %85 = vector.load %arg8[%c0_85, %c0_86] : memref<128x2xf32, #tpu.memory_space<vmem>>, vector<128x2xf32>
    %cst_87 = arith.constant dense<0.000000e+00> : vector<8x2xf32>
    %86 = tpu.matmul %84, %85, %cst_87 {dimension_numbers = #tpu.dot_dimension_numbers<[1], [0], [0], [1], [0, 0, 1, 1], [], []>} : vector<8x128xf32>, vector<128x2xf32>, vector<8x2xf32> -> vector<8x2xf32>
    %c0_88 = arith.constant 0 : index
    %c0_89 = arith.constant 0 : index
    %87 = vector.load %arg9[%c0_88, %c0_89] : memref<8x2xf32, #tpu.memory_space<vmem>>, vector<8x2xf32>
    %88 = arith.addf %86, %87 : vector<8x2xf32>
    %c0_90 = arith.constant 0 : index
    %c0_91 = arith.constant 0 : index
    %89 = vector.load %arg10[%c0_90, %c0_91] : memref<8x2xf32, #tpu.memory_space<vmem>>, vector<8x2xf32>
    tpu.vector_store %arg10[%c0_90, %c0_91], %88 {strides = array<i32>} : memref<8x2xf32, #tpu.memory_space<vmem>>, vector<8x2xf32>,
    return
  }
}

</mosaic_0001>

<llo_original>
// kernel: tpu_custom_call.1
$region0: #{tpu_custom_call.1}
  #allocation0 [shape = 'u32[]', space=smem, size = 0x4, offset = 0x4, fixed_abs, tag = 'smem constant byte address 0x4 - core index']
  #allocation1 [shape = 'u32[144,128]{1,0:T(1,128)}', space=vmem, size = 0x12000, scoped, tag = 'internal scratch']
  %s0 = inlined_call_operand.vmem [shape: f32[32,128], index: 0, kind: input, shape index: {}]
  %s1 = inlined_call_operand.vmem [shape: f32[32,128], index: 1, kind: input, shape index: {}]
  %s2 = inlined_call_operand.hbm [shape: f32[384,128], index: 2, kind: input, shape index: {}]
  %s3 = inlined_call_operand.hbm [shape: f32[384,128], index: 3, kind: input, shape index: {}]
  %s4 = inlined_call_operand.hbm [shape: f32[256,128], index: 4, kind: input, shape index: {}]
  %s5 = inlined_call_operand.hbm [shape: f32[256,128], index: 5, kind: input, shape index: {}]
  %s6 = inlined_call_operand.hbm [shape: f32[2,2,3,32,128], index: 6, kind: input, shape index: {}]
  %s7 = inlined_call_operand.vmem [shape: f32[2,32,128], index: 7, kind: input, shape index: {}]
  %s8 = inlined_call_operand.vmem [shape: f32[128,2], index: 8, kind: input, shape index: {}]
  %s9 = inlined_call_operand.vmem [shape: f32[8,2], index: 9, kind: input, shape index: {}]
  %s10 = inlined_call_operand.vmem [shape: f32[8,2], index: 10, kind: output, shape index: {}]
  %s11 = sld [smem:[#allocation0]]
  $region70: #{tpu_custom_call.1} parent=0
    _
  %s13 = ssub.s32 1, %s11
  %s14 = scalar_select 0, %s13, %s11
  $region1: #{tpu_custom_call.1} parent=0
    #allocation2 [shape = 'u8[196608]{0}', space=vmem, size = 0x30000, scoped, tag = 'input window, operand 2, single buffered']
    #allocation3 [shape = 's32[1]{0}', space=sflag, size = 0x4, scoped, tag = 'scoped memory for tpu_custom_call.1']
    #allocation4 [shape = 'u8[196608]{0}', space=vmem, size = 0x30000, scoped, tag = 'input window, operand 3, single buffered']
    #allocation5 [shape = 's32[1]{0}', space=sflag, size = 0x4, scoped, tag = 'scoped memory for tpu_custom_call.1']
    #allocation6 [shape = 'u8[131072]{0}', space=vmem, size = 0x20000, scoped, tag = 'input window, operand 4, single buffered']
    #allocation7 [shape = 'u8[131072]{0}', space=vmem, size = 0x20000, scoped, tag = 'input window, operand 5, single buffered']
    #allocation8 [shape = 's32[1]{0}', space=sflag, size = 0x4, scoped, tag = 'scoped memory for tpu_custom_call.1']
    #allocation9 [shape = 'u8[196608]{0}', space=vmem, size = 0x30000, scoped, tag = 'input window, operand 6, single buffered']
    %15 = vsyncpa [#allocation3], 0
    %16 = vsyncpa [#allocation5], 0
    %17 = vsyncpa [#allocation8], 0
    // Predicated region
    $region2: #{tpu_custom_call.1} parent=1 // pred_check
      _
    $region3: #{tpu_custom_call.1} parent=1 // pred_check_branch
      %19 = sbr.rel (0) target = $region5
    $region4: #{tpu_custom_call.1} parent=1 // pred_region
      _
    $region5: #{tpu_custom_call.1} parent=1 // pred_fallthru
      _
    // Predicated region
    $region6: #{tpu_custom_call.1} parent=1 // pred_check
      _
    $region7: #{tpu_custom_call.1} parent=1 // pred_check_branch
      %21 = sbr.rel (0) target = $region9
    $region8: #{tpu_custom_call.1} parent=1 // pred_region
      _
    $region9: #{tpu_custom_call.1} parent=1 // pred_fallthru
      _
    // Predicated region
    $region10: #{tpu_custom_call.1} parent=1 // pred_check
      _
    $region11: #{tpu_custom_call.1} parent=1 // pred_check_branch
      %23 = sbr.rel (0) target = $region13
    $region12: #{tpu_custom_call.1} parent=1 // pred_region
      %s25 = ssub.s32 6144, 6144
      %26 = vsyncadd [#allocation3], %s25
      %s27 = sshll.u32 [#allocation2], 4
      %s28 = int_to_ptr.vmem [resolvable:$true] %s27
      %33 = dma.hbm_to_vmem [thread:$0]  %s2, 6144, %s28, [#allocation3], 128, 128, 8
    $region13: #{tpu_custom_call.1} parent=1 // pred_fallthru
      _
    // Predicated region
    $region14: #{tpu_custom_call.1} parent=1 // pred_check
      _
    $region15: #{tpu_custom_call.1} parent=1 // pred_check_branch
      %35 = sbr.rel (0) target = $region17
    $region16: #{tpu_custom_call.1} parent=1 // pred_region
      %s37 = ssub.s32 6144, 6144
      %38 = vsyncadd [#allocation5], %s37
      %s39 = sshll.u32 [#allocation4], 4
      %s40 = int_to_ptr.vmem [resolvable:$true] %s39
      %45 = dma.hbm_to_vmem [thread:$0]  %s3, 6144, %s40, [#allocation5], 128, 128, 8
    $region17: #{tpu_custom_call.1} parent=1 // pred_fallthru
      _
    // Predicated region
    $region18: #{tpu_custom_call.1} parent=1 // pred_check
      _
    $region19: #{tpu_custom_call.1} parent=1 // pred_check_branch
      %47 = sbr.rel (0) target = $region21
    $region20: #{tpu_custom_call.1} parent=1 // pred_region
      %s49 = ssub.s32 4096, 4096
      %50 = vsyncadd [#allocation5], %s49
      %s51 = sshll.u32 [#allocation6], 4
      %s52 = int_to_ptr.vmem [resolvable:$true] %s51
      %57 = dma.hbm_to_vmem [thread:$0]  %s4, 4096, %s52, [#allocation5], 128, 128, 8
    $region21: #{tpu_custom_call.1} parent=1 // pred_fallthru
      _
    // Predicated region
    $region22: #{tpu_custom_call.1} parent=1 // pred_check
      _
    $region23: #{tpu_custom_call.1} parent=1 // pred_check_branch
      %59 = sbr.rel (0) target = $region25
    $region24: #{tpu_custom_call.1} parent=1 // pred_region
      %s61 = ssub.s32 4096, 4096
      %62 = vsyncadd [#allocation8], %s61
      %s63 = sshll.u32 [#allocation7], 4
      %s64 = int_to_ptr.vmem [resolvable:$true] %s63
      %69 = dma.hbm_to_vmem [thread:$0]  %s5, 4096, %s64, [#allocation8], 128, 128, 8
    $region25: #{tpu_custom_call.1} parent=1 // pred_fallthru
      _
    // Predicated region
    $region26: #{tpu_custom_call.1} parent=1 // pred_check
      _
    $region27: #{tpu_custom_call.1} parent=1 // pred_check_branch
      %71 = sbr.rel (0) target = $region29
    $region28: #{tpu_custom_call.1} parent=1 // pred_region
      %s73 = ssub.s32 6144, 6144
      %74 = vsyncadd [#allocation8], %s73
      %s75 = sshll.u32 [#allocation9], 4
      %s76 = int_to_ptr.vmem [resolvable:$true] %s75
      %81 = dma.hbm_to_vmem [thread:$0]  %s6, 6144, %s76, [#allocation8], 128, 128, 8
    $region29: #{tpu_custom_call.1} parent=1 // pred_fallthru
      _
    // Predicated region
    $region30: #{tpu_custom_call.1} parent=1 // pred_check
      _
    $region31: #{tpu_custom_call.1} parent=1 // pred_check_branch
      %83 = sbr.rel (0) target = $region33
    $region32: #{tpu_custom_call.1} parent=1 // pred_region
      _
    $region33: #{tpu_custom_call.1} parent=1 // pred_fallthru
      _
    // Predicated region
    $region34: #{tpu_custom_call.1} parent=1 // pred_check
      _
    $region35: #{tpu_custom_call.1} parent=1 // pred_check_branch
      %85 = sbr.rel (0) target = $region37
    $region36: #{tpu_custom_call.1} parent=1 // pred_region
      _
    $region37: #{tpu_custom_call.1} parent=1 // pred_fallthru
      _
    // Predicated region
    $region38: #{tpu_custom_call.1} parent=1 // pred_check
      _
    $region39: #{tpu_custom_call.1} parent=1 // pred_check_branch
      %87 = sbr.rel (0) target = $region41
    $region40: #{tpu_custom_call.1} parent=1 // pred_region
      _
    $region41: #{tpu_custom_call.1} parent=1 // pred_fallthru
      _
    // Predicated region
    $region42: #{tpu_custom_call.1} parent=1 // pred_check
      _
    $region43: #{tpu_custom_call.1} parent=1 // pred_check_branch
      %89 = sbr.rel (0) target = $region45
    $region44: #{tpu_custom_call.1} parent=1 // pred_region
      %90 = dma.done [#allocation3], 6144
    $region45: #{tpu_custom_call.1} parent=1 // pred_fallthru
      _
    // Predicated region
    $region46: #{tpu_custom_call.1} parent=1 // pred_check
      _
    $region47: #{tpu_custom_call.1} parent=1 // pred_check_branch
      %92 = sbr.rel (0) target = $region49
    $region48: #{tpu_custom_call.1} parent=1 // pred_region
      %93 = dma.done [#allocation5], 6144
    $region49: #{tpu_custom_call.1} parent=1 // pred_fallthru
      _
    // Predicated region
    $region50: #{tpu_custom_call.1} parent=1 // pred_check
      _
    $region51: #{tpu_custom_call.1} parent=1 // pred_check_branch
      %95 = sbr.rel (0) target = $region53
    $region52: #{tpu_custom_call.1} parent=1 // pred_region
      %96 = dma.done [#allocation5], 4096
    $region53: #{tpu_custom_call.1} parent=1 // pred_fallthru
      _
    // Predicated region
    $region54: #{tpu_custom_call.1} parent=1 // pred_check
      _
    $region55: #{tpu_custom_call.1} parent=1 // pred_check_branch
      %98 = sbr.rel (0) target = $region57
    $region56: #{tpu_custom_call.1} parent=1 // pred_region
      %99 = dma.done [#allocation8], 4096
    $region57: #{tpu_custom_call.1} parent=1 // pred_fallthru
      _
    // Predicated region
    $region58: #{tpu_custom_call.1} parent=1 // pred_check
      _
    $region59: #{tpu_custom_call.1} parent=1 // pred_check_branch
      %101 = sbr.rel (0) target = $region61
    $region60: #{tpu_custom_call.1} parent=1 // pred_region
      %102 = dma.done [#allocation8], 6144
    $region61: #{tpu_custom_call.1} parent=1 // pred_fallthru
      _
    %v103 = vld [vmem:[%s0] sm:$0xff]
    %v104 = vld [vmem:[%s0 + $0x8] sm:$0xff]
    %v105 = vld [vmem:[%s0 + $0x10] sm:$0xff]
    %v106 = vld [vmem:[%s0 + $0x18] sm:$0xff]
    %v107 = vld [vmem:[#allocation2] sm:$0xff]
    %v108 = vld [vmem:[#allocation2 + $0x8] sm:$0xff]
    %v109 = vld [vmem:[#allocation2 + $0x10] sm:$0xff]
    %v110 = vld [vmem:[#allocation2 + $0x18] sm:$0xff]
    %v111 = vld [vmem:[#allocation2 + $0x20] sm:$0xff]
    %v112 = vld [vmem:[#allocation2 + $0x28] sm:$0xff]
    %v113 = vld [vmem:[#allocation2 + $0x30] sm:$0xff]
    %v114 = vld [vmem:[#allocation2 + $0x38] sm:$0xff]
    %v115 = vld [vmem:[#allocation2 + $0x40] sm:$0xff]
    %v116 = vld [vmem:[#allocation2 + $0x48] sm:$0xff]
    %v117 = vld [vmem:[#allocation2 + $0x50] sm:$0xff]
    %v118 = vld [vmem:[#allocation2 + $0x58] sm:$0xff]
    %v119 = vld [vmem:[#allocation2 + $0x60] sm:$0xff]
    %v120 = vld [vmem:[#allocation2 + $0x68] sm:$0xff]
    %v121 = vld [vmem:[#allocation2 + $0x70] sm:$0xff]
    %v122 = vld [vmem:[#allocation2 + $0x78] sm:$0xff]
    %v123 = vld [vmem:[#allocation2 + $0x80] sm:$0xff]
    %v124 = vld [vmem:[#allocation2 + $0x88] sm:$0xff]
    %v125 = vld [vmem:[#allocation2 + $0x90] sm:$0xff]
    %v126 = vld [vmem:[#allocation2 + $0x98] sm:$0xff]
    %v127 = vld [vmem:[#allocation2 + $0xa0] sm:$0xff]
    %v128 = vld [vmem:[#allocation2 + $0xa8] sm:$0xff]
    %v129 = vld [vmem:[#allocation2 + $0xb0] sm:$0xff]
    %v130 = vld [vmem:[#allocation2 + $0xb8] sm:$0xff]
    %v131 = vld [vmem:[#allocation2 + $0xc0] sm:$0xff]
    %v132 = vld [vmem:[#allocation2 + $0xc8] sm:$0xff]
    %v133 = vld [vmem:[#allocation2 + $0xd0] sm:$0xff]
    %v134 = vld [vmem:[#allocation2 + $0xd8] sm:$0xff]
    %v135 = vld [vmem:[#allocation2 + $0xe0] sm:$0xff]
    %v136 = vld [vmem:[#allocation2 + $0xe8] sm:$0xff]
    %v137 = vld [vmem:[#allocation2 + $0xf0] sm:$0xff]
    %v138 = vld [vmem:[#allocation2 + $0xf8] sm:$0xff]
    %v139 = vld [vmem:[#allocation2 + $0x100] sm:$0xff]
    %v140 = vld [vmem:[#allocation2 + $0x108] sm:$0xff]
    %v141 = vld [vmem:[#allocation2 + $0x110] sm:$0xff]
    %v142 = vld [vmem:[#allocation2 + $0x118] sm:$0xff]
    %v143 = vld [vmem:[#allocation2 + $0x120] sm:$0xff]
    %v144 = vld [vmem:[#allocation2 + $0x128] sm:$0xff]
    %v145 = vld [vmem:[#allocation2 + $0x130] sm:$0xff]
    %v146 = vld [vmem:[#allocation2 + $0x138] sm:$0xff]
    %v147 = vld [vmem:[#allocation2 + $0x140] sm:$0xff]
    %v148 = vld [vmem:[#allocation2 + $0x148] sm:$0xff]
    %v149 = vld [vmem:[#allocation2 + $0x150] sm:$0xff]
    %v150 = vld [vmem:[#allocation2 + $0x158] sm:$0xff]
    %v151 = vld [vmem:[#allocation2 + $0x160] sm:$0xff]
    %v152 = vld [vmem:[#allocation2 + $0x168] sm:$0xff]
    %v153 = vld [vmem:[#allocation2 + $0x170] sm:$0xff]
    %v154 = vld [vmem:[#allocation2 + $0x178] sm:$0xff]
    %v155 = vld [vmem:[#allocation9] sm:$0xff]
    %v156 = vld [vmem:[#allocation9 + $0x8] sm:$0xff]
    %v157 = vld [vmem:[#allocation9 + $0x10] sm:$0xff]
    %v158 = vld [vmem:[#allocation9 + $0x18] sm:$0xff]
    %159 = vmatprep.subr.mxu0 0.0
    %160 = vmatpush1.msra.mxu0 %v107
    %161 = vmatprep.subr.mxu0 0.0
    %162 = vmatpush1.msra.mxu0 %v108
    %163 = vmatprep.subr.mxu0 0.0
    %164 = vmatpush1.msra.mxu0 %v109
    %165 = vmatprep.subr.mxu0 0.0
    %166 = vmatpush1.msra.mxu0 %v110
    %167 = vmatprep.subr.mxu0 0.0
    %168 = vmatpush1.msra.mxu0 %v111
    %169 = vmatprep.subr.mxu0 0.0
    %170 = vmatpush1.msra.mxu0 %v112
    %171 = vmatprep.subr.mxu0 0.0
    %172 = vmatpush1.msra.mxu0 %v113
    %173 = vmatprep.subr.mxu0 0.0
    %174 = vmatpush1.msra.mxu0 %v114
    %175 = vmatprep.subr.mxu0 0.0
    %176 = vmatpush1.msra.mxu0 %v115
    %177 = vmatprep.subr.mxu0 0.0
    %178 = vmatpush1.msra.mxu0 %v116
    %179 = vmatprep.subr.mxu0 0.0
    %180 = vmatpush1.msra.mxu0 %v117
    %181 = vmatprep.subr.mxu0 0.0
    %182 = vmatpush1.msra.mxu0 %v118
    %183 = vmatprep.subr.mxu0 0.0
    %184 = vmatpush1.msra.mxu0 %v119
    %185 = vmatprep.subr.mxu0 0.0
    %186 = vmatpush1.msra.mxu0 %v120
    %187 = vmatprep.subr.mxu0 0.0
    %188 = vmatpush1.msra.mxu0 %v121
    %189 = vmatprep.subr.mxu0 0.0
    %190 = vmatpush1.msra.mxu0 %v122
    %191 = vmatprep.subr.mxu0 0.0
    %192 = vmatpush1.msra.mxu0 %v123
    %193 = vmatprep.subr.mxu0 0.0
    %194 = vmatpush1.msra.mxu0 %v124
    %195 = vmatprep.subr.mxu0 0.0
    %196 = vmatpush1.msra.mxu0 %v125
    %197 = vmatprep.subr.mxu0 0.0
    %198 = vmatpush1.msra.mxu0 %v126
    %199 = vmatprep.subr.mxu0 0.0
    %200 = vmatpush1.msra.mxu0 %v127
    %201 = vmatprep.subr.mxu0 0.0
    %202 = vmatpush1.msra.mxu0 %v128
    %203 = vmatprep.subr.mxu0 0.0
    %204 = vmatpush1.msra.mxu0 %v129
    %205 = vmatprep.subr.mxu0 0.0
    %206 = vmatpush1.msra.mxu0 %v130
    %207 = vmatprep.subr.mxu0 0.0
    %208 = vmatpush1.msra.mxu0 %v131
    %209 = vmatprep.subr.mxu0 0.0
    %210 = vmatpush1.msra.mxu0 %v132
    %211 = vmatprep.subr.mxu0 0.0
    %212 = vmatpush1.msra.mxu0 %v133
    %213 = vmatprep.subr.mxu0 0.0
    %214 = vmatpush1.msra.mxu0 %v134
    %215 = vmatprep.subr.mxu0 0.0
    %216 = vmatpush1.msra.mxu0 %v135
    %217 = vmatprep.subr.mxu0 0.0
    %218 = vmatpush1.msra.mxu0 %v136
    %219 = vmatprep.subr.mxu0 0.0
    %220 = vmatpush1.msra.mxu0 %v137
    %221 = vmatprep.subr.mxu0 0.0
    %222 = vmatpush1.msra.mxu0 %v138
    %223 = vmatprep.mubr.f32.mxu0 0.0
    %224 = vmatmul.mubr.f32.gmra.mrb[0].mxu0 0.0
    %v225 = vpop.f32.mrb[0].mxu0
    %v226 = vadd.f32 %v155, %v225
    %v227 = vpop.f32.mrb[0].mxu0
    %228 = vmatprep.mubr.f32.mxu0 %v103
    %229 = vmatmul.mubr.f32.gmra.mrb[0].mxu0 0.0
    %v230 = vpop.f32.mrb[0].mxu0
    %v231 = vadd.f32 %v156, %v230
    %v232 = vpop.f32.mrb[0].mxu0
    %233 = vmatprep.mubr.f32.mxu0 %v104
    %234 = vmatmul.mubr.f32.gmra.mrb[0].mxu0 %v103
    %v235 = vpop.f32.mrb[0].mxu0
    %v236 = vadd.f32 %v157, %v235
    %v237 = vpop.f32.mrb[0].mxu0
    %238 = vmatprep.mubr.f32.mxu0 %v105
    %239 = vmatmul.mubr.f32.gmra.mrb[0].mxu0 %v104
    %v240 = vpop.f32.mrb[0].mxu0
    %v241 = vadd.f32 %v158, %v240
    %v242 = vpop.f32.mrb[0].mxu0
    %243 = vdwg.mxu0
    %244 = vmatprep.subr.mxu0 0.0
    %245 = vmatpush1.msra.mxu0 %v139
    %246 = vmatprep.subr.mxu0 0.0
    %247 = vmatpush1.msra.mxu0 %v140
    %248 = vmatprep.subr.mxu0 0.0
    %249 = vmatpush1.msra.mxu0 %v141
    %250 = vmatprep.subr.mxu0 0.0
    %251 = vmatpush1.msra.mxu0 %v142
    %252 = vmatprep.subr.mxu0 0.0
    %253 = vmatpush1.msra.mxu0 %v143
    %254 = vmatprep.subr.mxu0 0.0
    %255 = vmatpush1.msra.mxu0 %v144
    %256 = vmatprep.subr.mxu0 0.0
    %257 = vmatpush1.msra.mxu0 %v145
    %258 = vmatprep.subr.mxu0 0.0
    %259 = vmatpush1.msra.mxu0 %v146
    %260 = vmatprep.subr.mxu0 0.0
    %261 = vmatpush1.msra.mxu0 %v147
    %262 = vmatprep.subr.mxu0 0.0
    %263 = vmatpush1.msra.mxu0 %v148
    %264 = vmatprep.subr.mxu0 0.0
    %265 = vmatpush1.msra.mxu0 %v149
    %266 = vmatprep.subr.mxu0 0.0
    %267 = vmatpush1.msra.mxu0 %v150
    %268 = vmatprep.subr.mxu0 0.0
    %269 = vmatpush1.msra.mxu0 %v151
    %270 = vmatprep.subr.mxu0 0.0
    %271 = vmatpush1.msra.mxu0 %v152
    %272 = vmatprep.subr.mxu0 0.0
    %273 = vmatpush1.msra.mxu0 %v153
    %274 = vmatprep.subr.mxu0 0.0
    %275 = vmatpush1.msra.mxu0 %v154
    %276 = vmatprep.subr.mxu0 0.0
    %277 = vmatpush1.msra.mxu0 0.0
    %278 = vmatprep.subr.mxu0 0.0
    %279 = vmatpush1.msra.mxu0 0.0
    %280 = vmatprep.subr.mxu0 0.0
    %281 = vmatpush1.msra.mxu0 0.0
    %282 = vmatprep.subr.mxu0 0.0
    %283 = vmatpush1.msra.mxu0 0.0
    %284 = vmatprep.subr.mxu0 0.0
    %285 = vmatpush1.msra.mxu0 0.0
    %286 = vmatprep.subr.mxu0 0.0
    %287 = vmatpush1.msra.mxu0 0.0
    %288 = vmatprep.subr.mxu0 0.0
    %289 = vmatpush1.msra.mxu0 0.0
    %290 = vmatprep.subr.mxu0 0.0
    %291 = vmatpush1.msra.mxu0 0.0
    %292 = vmatprep.subr.mxu0 0.0
    %293 = vmatpush1.msra.mxu0 0.0
    %294 = vmatprep.subr.mxu0 0.0
    %295 = vmatpush1.msra.mxu0 0.0
    %296 = vmatprep.subr.mxu0 0.0
    %297 = vmatpush1.msra.mxu0 0.0
    %298 = vmatprep.subr.mxu0 0.0
    %299 = vmatpush1.msra.mxu0 0.0
    %300 = vmatprep.subr.mxu0 0.0
    %301 = vmatpush1.msra.mxu0 0.0
    %302 = vmatprep.subr.mxu0 0.0
    %303 = vmatpush1.msra.mxu0 0.0
    %304 = vmatprep.subr.mxu0 0.0
    %305 = vmatpush1.msra.mxu0 0.0
    %306 = vmatprep.subr.mxu0 0.0
    %307 = vmatpush1.msra.mxu0 0.0
    %308 = vmatprep.mubr.f32.mxu0 0.0
    %309 = vmatmul.mubr.f32.gmra.mrb[0].mxu0 %v103
    %v310 = vpop.f32.mrb[0].mxu0
    %v311 = vadd.f32 %v226, %v310
    %v312 = vpop.f32.mrb[0].mxu0
    %313 = vmatprep.mubr.f32.mxu0 0.0
    %314 = vmatmul.mubr.f32.gmra.mrb[0].mxu0 %v104
    %v315 = vpop.f32.mrb[0].mxu0
    %v316 = vadd.f32 %v231, %v315
    %v317 = vpop.f32.mrb[0].mxu0
    %318 = vmatprep.mubr.f32.mxu0 0.0
    %319 = vmatmul.mubr.f32.gmra.mrb[0].mxu0 %v105
    %v320 = vpop.f32.mrb[0].mxu0
    %v321 = vadd.f32 %v236, %v320
    %v322 = vpop.f32.mrb[0].mxu0
    %323 = vmatprep.mubr.f32.mxu0 0.0
    %324 = vmatmul.mubr.f32.gmra.mrb[0].mxu0 %v106
    %v325 = vpop.f32.mrb[0].mxu0
    %v326 = vadd.f32 %v241, %v325
    %v327 = vpop.f32.mrb[0].mxu0
    %328 = vdwg.mxu0
    %v329 = vtanh.pop %v311
    %v330 = vtanh.pop %v316
    %v331 = vtanh.pop %v321
    %v332 = vtanh.pop %v326
    %s333 = scalar_lea.vmem [#allocation9], 32
    %v334 = vld [vmem:[%s333] sm:$0xff]
    %v335 = vld [vmem:[%s333 + $0x8] sm:$0xff]
    %v336 = vld [vmem:[%s333 + $0x10] sm:$0xff]
    %v337 = vld [vmem:[%s333 + $0x18] sm:$0xff]
    %v338 = vmul.f32 %v329, %v334
    %v339 = vmul.f32 %v330, %v335
    %v340 = vmul.f32 %v331, %v336
    %v341 = vmul.f32 %v332, %v337
    %s342 = scalar_lea.vmem [#allocation9], 64
    %v343 = vld [vmem:[%s342] sm:$0xff]
    %v344 = vld [vmem:[%s342 + $0x8] sm:$0xff]
    %v345 = vld [vmem:[%s342 + $0x10] sm:$0xff]
    %v346 = vld [vmem:[%s342 + $0x18] sm:$0xff]
    %v347 = vadd.f32 %v338, %v343
    %v348 = vadd.f32 %v339, %v344
    %v349 = vadd.f32 %v340, %v345
    %v350 = vadd.f32 %v341, %v346
    %v351 = vld [vmem:[#allocation4] sm:$0xff]
    %v352 = vld [vmem:[#allocation4 + $0x8] sm:$0xff]
    %v353 = vld [vmem:[#allocation4 + $0x10] sm:$0xff]
    %v354 = vld [vmem:[#allocation4 + $0x18] sm:$0xff]
    %v355 = vld [vmem:[#allocation4 + $0x20] sm:$0xff]
    %v356 = vld [vmem:[#allocation4 + $0x28] sm:$0xff]
    %v357 = vld [vmem:[#allocation4 + $0x30] sm:$0xff]
    %v358 = vld [vmem:[#allocation4 + $0x38] sm:$0xff]
    %v359 = vld [vmem:[#allocation4 + $0x40] sm:$0xff]
    %v360 = vld [vmem:[#allocation4 + $0x48] sm:$0xff]
    %v361 = vld [vmem:[#allocation4 + $0x50] sm:$0xff]
    %v362 = vld [vmem:[#allocation4 + $0x58] sm:$0xff]
    %v363 = vld [vmem:[#allocation4 + $0x60] sm:$0xff]
    %v364 = vld [vmem:[#allocation4 + $0x68] sm:$0xff]
    %v365 = vld [vmem:[#allocation4 + $0x70] sm:$0xff]
    %v366 = vld [vmem:[#allocation4 + $0x78] sm:$0xff]
    %v367 = vld [vmem:[#allocation4 + $0x80] sm:$0xff]
    %v368 = vld [vmem:[#allocation4 + $0x88] sm:$0xff]
    %v369 = vld [vmem:[#allocation4 + $0x90] sm:$0xff]
    %v370 = vld [vmem:[#allocation4 + $0x98] sm:$0xff]
    %v371 = vld [vmem:[#allocation4 + $0xa0] sm:$0xff]
    %v372 = vld [vmem:[#allocation4 + $0xa8] sm:$0xff]
    %v373 = vld [vmem:[#allocation4 + $0xb0] sm:$0xff]
    %v374 = vld [vmem:[#allocation4 + $0xb8] sm:$0xff]
    %v375 = vld [vmem:[#allocation4 + $0xc0] sm:$0xff]
    %v376 = vld [vmem:[#allocation4 + $0xc8] sm:$0xff]
    %v377 = vld [vmem:[#allocation4 + $0xd0] sm:$0xff]
    %v378 = vld [vmem:[#allocation4 + $0xd8] sm:$0xff]
    %v379 = vld [vmem:[#allocation4 + $0xe0] sm:$0xff]
    %v380 = vld [vmem:[#allocation4 + $0xe8] sm:$0xff]
    %v381 = vld [vmem:[#allocation4 + $0xf0] sm:$0xff]
    %v382 = vld [vmem:[#allocation4 + $0xf8] sm:$0xff]
    %v383 = vld [vmem:[#allocation4 + $0x100] sm:$0xff]
    %v384 = vld [vmem:[#allocation4 + $0x108] sm:$0xff]
    %v385 = vld [vmem:[#allocation4 + $0x110] sm:$0xff]
    %v386 = vld [vmem:[#allocation4 + $0x118] sm:$0xff]
    %v387 = vld [vmem:[#allocation4 + $0x120] sm:$0xff]
    %v388 = vld [vmem:[#allocation4 + $0x128] sm:$0xff]
    %v389 = vld [vmem:[#allocation4 + $0x130] sm:$0xff]
    %v390 = vld [vmem:[#allocation4 + $0x138] sm:$0xff]
    %v391 = vld [vmem:[#allocation4 + $0x140] sm:$0xff]
    %v392 = vld [vmem:[#allocation4 + $0x148] sm:$0xff]
    %v393 = vld [vmem:[#allocation4 + $0x150] sm:$0xff]
    %v394 = vld [vmem:[#allocation4 + $0x158] sm:$0xff]
    %v395 = vld [vmem:[#allocation4 + $0x160] sm:$0xff]
    %v396 = vld [vmem:[#allocation4 + $0x168] sm:$0xff]
    %v397 = vld [vmem:[#allocation4 + $0x170] sm:$0xff]
    %v398 = vld [vmem:[#allocation4 + $0x178] sm:$0xff]
    %s399 = scalar_lea.vmem [#allocation9], 96
    %v400 = vld [vmem:[%s399] sm:$0xff]
    %v401 = vld [vmem:[%s399 + $0x8] sm:$0xff]
    %v402 = vld [vmem:[%s399 + $0x10] sm:$0xff]
    %v403 = vld [vmem:[%s399 + $0x18] sm:$0xff]
    %404 = vmatprep.subr.mxu0 0.0
    %405 = vmatpush1.msra.mxu0 %v351
    %406 = vmatprep.subr.mxu0 0.0
    %407 = vmatpush1.msra.mxu0 %v352
    %408 = vmatprep.subr.mxu0 0.0
    %409 = vmatpush1.msra.mxu0 %v353
    %410 = vmatprep.subr.mxu0 0.0
    %411 = vmatpush1.msra.mxu0 %v354
    %412 = vmatprep.subr.mxu0 0.0
    %413 = vmatpush1.msra.mxu0 %v355
    %414 = vmatprep.subr.mxu0 0.0
    %415 = vmatpush1.msra.mxu0 %v356
    %416 = vmatprep.subr.mxu0 0.0
    %417 = vmatpush1.msra.mxu0 %v357
    %418 = vmatprep.subr.mxu0 0.0
    %419 = vmatpush1.msra.mxu0 %v358
    %420 = vmatprep.subr.mxu0 0.0
    %421 = vmatpush1.msra.mxu0 %v359
    %422 = vmatprep.subr.mxu0 0.0
    %423 = vmatpush1.msra.mxu0 %v360
    %424 = vmatprep.subr.mxu0 0.0
    %425 = vmatpush1.msra.mxu0 %v361
    %426 = vmatprep.subr.mxu0 0.0
    %427 = vmatpush1.msra.mxu0 %v362
    %428 = vmatprep.subr.mxu0 0.0
    %429 = vmatpush1.msra.mxu0 %v363
    %430 = vmatprep.subr.mxu0 0.0
    %431 = vmatpush1.msra.mxu0 %v364
    %432 = vmatprep.subr.mxu0 0.0
    %433 = vmatpush1.msra.mxu0 %v365
    %434 = vmatprep.subr.mxu0 0.0
    %435 = vmatpush1.msra.mxu0 %v366
    %436 = vmatprep.subr.mxu0 0.0
    %437 = vmatpush1.msra.mxu0 %v367
    %438 = vmatprep.subr.mxu0 0.0
    %439 = vmatpush1.msra.mxu0 %v368
    %440 = vmatprep.subr.mxu0 0.0
    %441 = vmatpush1.msra.mxu0 %v369
    %442 = vmatprep.subr.mxu0 0.0
    %443 = vmatpush1.msra.mxu0 %v370
    %444 = vmatprep.subr.mxu0 0.0
    %445 = vmatpush1.msra.mxu0 %v371
    %446 = vmatprep.subr.mxu0 0.0
    %447 = vmatpush1.msra.mxu0 %v372
    %448 = vmatprep.subr.mxu0 0.0
    %449 = vmatpush1.msra.mxu0 %v373
    %450 = vmatprep.subr.mxu0 0.0
    %451 = vmatpush1.msra.mxu0 %v374
    %452 = vmatprep.subr.mxu0 0.0
    %453 = vmatpush1.msra.mxu0 %v375
    %454 = vmatprep.subr.mxu0 0.0
    %455 = vmatpush1.msra.mxu0 %v376
    %456 = vmatprep.subr.mxu0 0.0
    %457 = vmatpush1.msra.mxu0 %v377
    %458 = vmatprep.subr.mxu0 0.0
    %459 = vmatpush1.msra.mxu0 %v378
    %460 = vmatprep.subr.mxu0 0.0
    %461 = vmatpush1.msra.mxu0 %v379
    %462 = vmatprep.subr.mxu0 0.0
    %463 = vmatpush1.msra.mxu0 %v380
    %464 = vmatprep.subr.mxu0 0.0
    %465 = vmatpush1.msra.mxu0 %v381
    %466 = vmatprep.subr.mxu0 0.0
    %467 = vmatpush1.msra.mxu0 %v382
    %468 = vmatprep.mubr.f32.mxu0 0.0
    %469 = vmatmul.mubr.f32.gmra.mrb[0].mxu0 0.0
    %v470 = vpop.f32.mrb[0].mxu0
    %v471 = vadd.f32 %v400, %v470
    %v472 = vpop.f32.mrb[0].mxu0
    %473 = vmatprep.mubr.f32.mxu0 %v347
    %474 = vmatmul.mubr.f32.gmra.mrb[0].mxu0 0.0
    %v475 = vpop.f32.mrb[0].mxu0
    %v476 = vadd.f32 %v401, %v475
    %v477 = vpop.f32.mrb[0].mxu0
    %478 = vmatprep.mubr.f32.mxu0 %v348
    %479 = vmatmul.mubr.f32.gmra.mrb[0].mxu0 %v347
    %v480 = vpop.f32.mrb[0].mxu0
    %v481 = vadd.f32 %v402, %v480
    %v482 = vpop.f32.mrb[0].mxu0
    %483 = vmatprep.mubr.f32.mxu0 %v349
    %484 = vmatmul.mubr.f32.gmra.mrb[0].mxu0 %v348
    %v485 = vpop.f32.mrb[0].mxu0
    %v486 = vadd.f32 %v403, %v485
    %v487 = vpop.f32.mrb[0].mxu0
    %488 = vdwg.mxu0
    %489 = vmatprep.subr.mxu0 0.0
    %490 = vmatpush1.msra.mxu0 %v383
    %491 = vmatprep.subr.mxu0 0.0
    %492 = vmatpush1.msra.mxu0 %v384
    %493 = vmatprep.subr.mxu0 0.0
    %494 = vmatpush1.msra.mxu0 %v385
    %495 = vmatprep.subr.mxu0 0.0
    %496 = vmatpush1.msra.mxu0 %v386
    %497 = vmatprep.subr.mxu0 0.0
    %498 = vmatpush1.msra.mxu0 %v387
    %499 = vmatprep.subr.mxu0 0.0
    %500 = vmatpush1.msra.mxu0 %v388
    %501 = vmatprep.subr.mxu0 0.0
    %502 = vmatpush1.msra.mxu0 %v389
    %503 = vmatprep.subr.mxu0 0.0
    %504 = vmatpush1.msra.mxu0 %v390
    %505 = vmatprep.subr.mxu0 0.0
    %506 = vmatpush1.msra.mxu0 %v391
    %507 = vmatprep.subr.mxu0 0.0
    %508 = vmatpush1.msra.mxu0 %v392
    %509 = vmatprep.subr.mxu0 0.0
    %510 = vmatpush1.msra.mxu0 %v393
    %511 = vmatprep.subr.mxu0 0.0
    %512 = vmatpush1.msra.mxu0 %v394
    %513 = vmatprep.subr.mxu0 0.0
    %514 = vmatpush1.msra.mxu0 %v395
    %515 = vmatprep.subr.mxu0 0.0
    %516 = vmatpush1.msra.mxu0 %v396
    %517 = vmatprep.subr.mxu0 0.0
    %518 = vmatpush1.msra.mxu0 %v397
    %519 = vmatprep.subr.mxu0 0.0
    %520 = vmatpush1.msra.mxu0 %v398
    %521 = vmatprep.subr.mxu0 0.0
    %522 = vmatpush1.msra.mxu0 0.0
    %523 = vmatprep.subr.mxu0 0.0
    %524 = vmatpush1.msra.mxu0 0.0
    %525 = vmatprep.subr.mxu0 0.0
    %526 = vmatpush1.msra.mxu0 0.0
    %527 = vmatprep.subr.mxu0 0.0
    %528 = vmatpush1.msra.mxu0 0.0
    %529 = vmatprep.subr.mxu0 0.0
    %530 = vmatpush1.msra.mxu0 0.0
    %531 = vmatprep.subr.mxu0 0.0
    %532 = vmatpush1.msra.mxu0 0.0
    %533 = vmatprep.subr.mxu0 0.0
    %534 = vmatpush1.msra.mxu0 0.0
    %535 = vmatprep.subr.mxu0 0.0
    %536 = vmatpush1.msra.mxu0 0.0
    %537 = vmatprep.subr.mxu0 0.0
    %538 = vmatpush1.msra.mxu0 0.0
    %539 = vmatprep.subr.mxu0 0.0
    %540 = vmatpush1.msra.mxu0 0.0
    %541 = vmatprep.subr.mxu0 0.0
    %542 = vmatpush1.msra.mxu0 0.0
    %543 = vmatprep.subr.mxu0 0.0
    %544 = vmatpush1.msra.mxu0 0.0
    %545 = vmatprep.subr.mxu0 0.0
    %546 = vmatpush1.msra.mxu0 0.0
    %547 = vmatprep.subr.mxu0 0.0
    %548 = vmatpush1.msra.mxu0 0.0
    %549 = vmatprep.subr.mxu0 0.0
    %550 = vmatpush1.msra.mxu0 0.0
    %551 = vmatprep.subr.mxu0 0.0
    %552 = vmatpush1.msra.mxu0 0.0
    %553 = vmatprep.mubr.f32.mxu0 0.0
    %554 = vmatmul.mubr.f32.gmra.mrb[0].mxu0 %v347
    %v555 = vpop.f32.mrb[0].mxu0
    %v556 = vadd.f32 %v471, %v555
    %v557 = vpop.f32.mrb[0].mxu0
    %558 = vmatprep.mubr.f32.mxu0 0.0
    %559 = vmatmul.mubr.f32.gmra.mrb[0].mxu0 %v348
    %v560 = vpop.f32.mrb[0].mxu0
    %v561 = vadd.f32 %v476, %v560
    %v562 = vpop.f32.mrb[0].mxu0
    %563 = vmatprep.mubr.f32.mxu0 0.0
    %564 = vmatmul.mubr.f32.gmra.mrb[0].mxu0 %v349
    %v565 = vpop.f32.mrb[0].mxu0
    %v566 = vadd.f32 %v481, %v565
    %v567 = vpop.f32.mrb[0].mxu0
    %568 = vmatprep.mubr.f32.mxu0 0.0
    %569 = vmatmul.mubr.f32.gmra.mrb[0].mxu0 %v350
    %v570 = vpop.f32.mrb[0].mxu0
    %v571 = vadd.f32 %v486, %v570
    %v572 = vpop.f32.mrb[0].mxu0
    %573 = vdwg.mxu0
    %v574 = vtanh.pop %v556
    %v575 = vtanh.pop %v561
    %v576 = vtanh.pop %v566
    %v577 = vtanh.pop %v571
    %s578 = scalar_lea.vmem [#allocation9], 128
    %v579 = vld [vmem:[%s578] sm:$0xff]
    %v580 = vld [vmem:[%s578 + $0x8] sm:$0xff]
    %v581 = vld [vmem:[%s578 + $0x10] sm:$0xff]
    %v582 = vld [vmem:[%s578 + $0x18] sm:$0xff]
    %v583 = vmul.f32 %v574, %v579
    %v584 = vmul.f32 %v575, %v580
    %v585 = vmul.f32 %v576, %v581
    %v586 = vmul.f32 %v577, %v582
    %s587 = scalar_lea.vmem [#allocation9], 160
    %v588 = vld [vmem:[%s587] sm:$0xff]
    %v589 = vld [vmem:[%s587 + $0x8] sm:$0xff]
    %v590 = vld [vmem:[%s587 + $0x10] sm:$0xff]
    %v591 = vld [vmem:[%s587 + $0x18] sm:$0xff]
    %v592 = vadd.f32 %v583, %v588
    %v593 = vadd.f32 %v584, %v589
    %v594 = vadd.f32 %v585, %v590
    %v595 = vadd.f32 %v586, %v591
    %v596 = vld [vmem:[%s7] sm:$0xff]
    %v597 = vld [vmem:[%s7 + $0x8] sm:$0xff]
    %v598 = vld [vmem:[%s7 + $0x10] sm:$0xff]
    %v599 = vld [vmem:[%s7 + $0x18] sm:$0xff]
    %v600 = vld [vmem:[%s1] sm:$0xff]
    %v601 = vld [vmem:[%s1 + $0x8] sm:$0xff]
    %v602 = vld [vmem:[%s1 + $0x10] sm:$0xff]
    %v603 = vld [vmem:[%s1 + $0x18] sm:$0xff]
    %v604 = vmul.f32 %v596, %v600
    %v605 = vmul.f32 %v597, %v601
    %v606 = vmul.f32 %v598, %v602
    %v607 = vmul.f32 %v599, %v603
    %s608 = scalar_lea.vmem %s7, 32
    %v609 = vld [vmem:[%s608] sm:$0xff]
    %v610 = vld [vmem:[%s608 + $0x8] sm:$0xff]
    %v611 = vld [vmem:[%s608 + $0x10] sm:$0xff]
    %v612 = vld [vmem:[%s608 + $0x18] sm:$0xff]
    %v613 = vadd.f32 %v604, %v609
    %v614 = vadd.f32 %v605, %v610
    %v615 = vadd.f32 %v606, %v611
    %v616 = vadd.f32 %v607, %v612
    %v617 = vadd.f32 %v592, %v613
    %v618 = vadd.f32 %v593, %v614
    %v619 = vadd.f32 %v594, %v615
    %v620 = vadd.f32 %v595, %v616
    %v621 = vtanh.pop %v617
    %v622 = vtanh.pop %v618
    %v623 = vtanh.pop %v619
    %v624 = vtanh.pop %v620
    %v625 = vld [vmem:[#allocation6] sm:$0xff]
    %v626 = vld [vmem:[#allocation6 + $0x8] sm:$0xff]
    %v627 = vld [vmem:[#allocation6 + $0x10] sm:$0xff]
    %v628 = vld [vmem:[#allocation6 + $0x18] sm:$0xff]
    %v629 = vld [vmem:[#allocation6 + $0x20] sm:$0xff]
    %v630 = vld [vmem:[#allocation6 + $0x28] sm:$0xff]
    %v631 = vld [vmem:[#allocation6 + $0x30] sm:$0xff]
    %v632 = vld [vmem:[#allocation6 + $0x38] sm:$0xff]
    %v633 = vld [vmem:[#allocation6 + $0x40] sm:$0xff]
    %v634 = vld [vmem:[#allocation6 + $0x48] sm:$0xff]
    %v635 = vld [vmem:[#allocation6 + $0x50] sm:$0xff]
    %v636 = vld [vmem:[#allocation6 + $0x58] sm:$0xff]
    %v637 = vld [vmem:[#allocation6 + $0x60] sm:$0xff]
    %v638 = vld [vmem:[#allocation6 + $0x68] sm:$0xff]
    %v639 = vld [vmem:[#allocation6 + $0x70] sm:$0xff]
    %v640 = vld [vmem:[#allocation6 + $0x78] sm:$0xff]
    %v641 = vld [vmem:[#allocation6 + $0x80] sm:$0xff]
    %v642 = vld [vmem:[#allocation6 + $0x88] sm:$0xff]
    %v643 = vld [vmem:[#allocation6 + $0x90] sm:$0xff]
    %v644 = vld [vmem:[#allocation6 + $0x98] sm:$0xff]
    %v645 = vld [vmem:[#allocation6 + $0xa0] sm:$0xff]
    %v646 = vld [vmem:[#allocation6 + $0xa8] sm:$0xff]
    %v647 = vld [vmem:[#allocation6 + $0xb0] sm:$0xff]
    %v648 = vld [vmem:[#allocation6 + $0xb8] sm:$0xff]
    %v649 = vld [vmem:[#allocation6 + $0xc0] sm:$0xff]
    %v650 = vld [vmem:[#allocation6 + $0xc8] sm:$0xff]
    %v651 = vld [vmem:[#allocation6 + $0xd0] sm:$0xff]
    %v652 = vld [vmem:[#allocation6 + $0xd8] sm:$0xff]
    %v653 = vld [vmem:[#allocation6 + $0xe0] sm:$0xff]
    %v654 = vld [vmem:[#allocation6 + $0xe8] sm:$0xff]
    %v655 = vld [vmem:[#allocation6 + $0xf0] sm:$0xff]
    %v656 = vld [vmem:[#allocation6 + $0xf8] sm:$0xff]
    %s657 = scalar_lea.vmem [#allocation9], 192
    %v658 = vld [vmem:[%s657] sm:$0xff]
    %v659 = vld [vmem:[%s657 + $0x8] sm:$0xff]
    %v660 = vld [vmem:[%s657 + $0x10] sm:$0xff]
    %v661 = vld [vmem:[%s657 + $0x18] sm:$0xff]
    %662 = vmatprep.subr.mxu0 0.0
    %663 = vmatpush1.msra.mxu0 %v625
    %664 = vmatprep.subr.mxu0 0.0
    %665 = vmatpush1.msra.mxu0 %v626
    %666 = vmatprep.subr.mxu0 0.0
    %667 = vmatpush1.msra.mxu0 %v627
    %668 = vmatprep.subr.mxu0 0.0
    %669 = vmatpush1.msra.mxu0 %v628
    %670 = vmatprep.subr.mxu0 0.0
    %671 = vmatpush1.msra.mxu0 %v629
    %672 = vmatprep.subr.mxu0 0.0
    %673 = vmatpush1.msra.mxu0 %v630
    %674 = vmatprep.subr.mxu0 0.0
    %675 = vmatpush1.msra.mxu0 %v631
    %676 = vmatprep.subr.mxu0 0.0
    %677 = vmatpush1.msra.mxu0 %v632
    %678 = vmatprep.subr.mxu0 0.0
    %679 = vmatpush1.msra.mxu0 %v633
    %680 = vmatprep.subr.mxu0 0.0
    %681 = vmatpush1.msra.mxu0 %v634
    %682 = vmatprep.subr.mxu0 0.0
    %683 = vmatpush1.msra.mxu0 %v635
    %684 = vmatprep.subr.mxu0 0.0
    %685 = vmatpush1.msra.mxu0 %v636
    %686 = vmatprep.subr.mxu0 0.0
    %687 = vmatpush1.msra.mxu0 %v637
    %688 = vmatprep.subr.mxu0 0.0
    %689 = vmatpush1.msra.mxu0 %v638
    %690 = vmatprep.subr.mxu0 0.0
    %691 = vmatpush1.msra.mxu0 %v639
    %692 = vmatprep.subr.mxu0 0.0
    %693 = vmatpush1.msra.mxu0 %v640
    %694 = vmatprep.subr.mxu0 0.0
    %695 = vmatpush1.msra.mxu0 %v641
    %696 = vmatprep.subr.mxu0 0.0
    %697 = vmatpush1.msra.mxu0 %v642
    %698 = vmatprep.subr.mxu0 0.0
    %699 = vmatpush1.msra.mxu0 %v643
    %700 = vmatprep.subr.mxu0 0.0
    %701 = vmatpush1.msra.mxu0 %v644
    %702 = vmatprep.subr.mxu0 0.0
    %703 = vmatpush1.msra.mxu0 %v645
    %704 = vmatprep.subr.mxu0 0.0
    %705 = vmatpush1.msra.mxu0 %v646
    %706 = vmatprep.subr.mxu0 0.0
    %707 = vmatpush1.msra.mxu0 %v647
    %708 = vmatprep.subr.mxu0 0.0
    %709 = vmatpush1.msra.mxu0 %v648
    %710 = vmatprep.subr.mxu0 0.0
    %711 = vmatpush1.msra.mxu0 %v649
    %712 = vmatprep.subr.mxu0 0.0
    %713 = vmatpush1.msra.mxu0 %v650
    %714 = vmatprep.subr.mxu0 0.0
    %715 = vmatpush1.msra.mxu0 %v651
    %716 = vmatprep.subr.mxu0 0.0
    %717 = vmatpush1.msra.mxu0 %v652
    %718 = vmatprep.subr.mxu0 0.0
    %719 = vmatpush1.msra.mxu0 %v653
    %720 = vmatprep.subr.mxu0 0.0
    %721 = vmatpush1.msra.mxu0 %v654
    %722 = vmatprep.subr.mxu0 0.0
    %723 = vmatpush1.msra.mxu0 %v655
    %724 = vmatprep.subr.mxu0 0.0
    %725 = vmatpush1.msra.mxu0 %v656
    %726 = vmatprep.mubr.f32.mxu0 %v621
    %727 = vmatmul.mubr.f32.gmra.mrb[0].mxu0 0.0
    %v728 = vpop.f32.mrb[0].mxu0
    %v729 = vadd.f32 %v658, %v728
    %v730 = vpop.f32.mrb[0].mxu0
    %731 = vmatprep.mubr.f32.mxu0 %v622
    %732 = vmatmul.mubr.f32.gmra.mrb[0].mxu0 0.0
    %v733 = vpop.f32.mrb[0].mxu0
    %v734 = vadd.f32 %v659, %v733
    %v735 = vpop.f32.mrb[0].mxu0
    %736 = vmatprep.mubr.f32.mxu0 %v623
    %737 = vmatmul.mubr.f32.gmra.mrb[0].mxu0 %v621
    %v738 = vpop.f32.mrb[0].mxu0
    %v739 = vadd.f32 %v660, %v738
    %v740 = vpop.f32.mrb[0].mxu0
    %741 = vmatprep.mubr.f32.mxu0 %v624
    %742 = vmatmul.mubr.f32.gmra.mrb[0].mxu0 %v622
    %v743 = vpop.f32.mrb[0].mxu0
    %v744 = vadd.f32 %v661, %v743
    %v745 = vpop.f32.mrb[0].mxu0
    %746 = vdwg.mxu0
    %v747 = vtanh.pop %v729
    %v748 = vtanh.pop %v734
    %v749 = vtanh.pop %v739
    %v750 = vtanh.pop %v744
    %s751 = scalar_lea.vmem [#allocation9], 224
    %v752 = vld [vmem:[%s751] sm:$0xff]
    %v753 = vld [vmem:[%s751 + $0x8] sm:$0xff]
    %v754 = vld [vmem:[%s751 + $0x10] sm:$0xff]
    %v755 = vld [vmem:[%s751 + $0x18] sm:$0xff]
    %v756 = vmul.f32 %v747, %v752
    %v757 = vmul.f32 %v748, %v753
    %v758 = vmul.f32 %v749, %v754
    %v759 = vmul.f32 %v750, %v755
    %s760 = scalar_lea.vmem [#allocation9], 256
    %v761 = vld [vmem:[%s760] sm:$0xff]
    %v762 = vld [vmem:[%s760 + $0x8] sm:$0xff]
    %v763 = vld [vmem:[%s760 + $0x10] sm:$0xff]
    %v764 = vld [vmem:[%s760 + $0x18] sm:$0xff]
    %v765 = vadd.f32 %v756, %v761
    %v766 = vadd.f32 %v757, %v762
    %v767 = vadd.f32 %v758, %v763
    %v768 = vadd.f32 %v759, %v764
    %v769 = vld [vmem:[#allocation7] sm:$0xff]
    %v770 = vld [vmem:[#allocation7 + $0x8] sm:$0xff]
    %v771 = vld [vmem:[#allocation7 + $0x10] sm:$0xff]
    %v772 = vld [vmem:[#allocation7 + $0x18] sm:$0xff]
    %v773 = vld [vmem:[#allocation7 + $0x20] sm:$0xff]
    %v774 = vld [vmem:[#allocation7 + $0x28] sm:$0xff]
    %v775 = vld [vmem:[#allocation7 + $0x30] sm:$0xff]
    %v776 = vld [vmem:[#allocation7 + $0x38] sm:$0xff]
    %v777 = vld [vmem:[#allocation7 + $0x40] sm:$0xff]
    %v778 = vld [vmem:[#allocation7 + $0x48] sm:$0xff]
    %v779 = vld [vmem:[#allocation7 + $0x50] sm:$0xff]
    %v780 = vld [vmem:[#allocation7 + $0x58] sm:$0xff]
    %v781 = vld [vmem:[#allocation7 + $0x60] sm:$0xff]
    %v782 = vld [vmem:[#allocation7 + $0x68] sm:$0xff]
    %v783 = vld [vmem:[#allocation7 + $0x70] sm:$0xff]
    %v784 = vld [vmem:[#allocation7 + $0x78] sm:$0xff]
    %v785 = vld [vmem:[#allocation7 + $0x80] sm:$0xff]
    %v786 = vld [vmem:[#allocation7 + $0x88] sm:$0xff]
    %v787 = vld [vmem:[#allocation7 + $0x90] sm:$0xff]
    %v788 = vld [vmem:[#allocation7 + $0x98] sm:$0xff]
    %v789 = vld [vmem:[#allocation7 + $0xa0] sm:$0xff]
    %v790 = vld [vmem:[#allocation7 + $0xa8] sm:$0xff]
    %v791 = vld [vmem:[#allocation7 + $0xb0] sm:$0xff]
    %v792 = vld [vmem:[#allocation7 + $0xb8] sm:$0xff]
    %v793 = vld [vmem:[#allocation7 + $0xc0] sm:$0xff]
    %v794 = vld [vmem:[#allocation7 + $0xc8] sm:$0xff]
    %v795 = vld [vmem:[#allocation7 + $0xd0] sm:$0xff]
    %v796 = vld [vmem:[#allocation7 + $0xd8] sm:$0xff]
    %v797 = vld [vmem:[#allocation7 + $0xe0] sm:$0xff]
    %v798 = vld [vmem:[#allocation7 + $0xe8] sm:$0xff]
    %v799 = vld [vmem:[#allocation7 + $0xf0] sm:$0xff]
    %v800 = vld [vmem:[#allocation7 + $0xf8] sm:$0xff]
    %s801 = scalar_lea.vmem [#allocation9], 288
    %v802 = vld [vmem:[%s801 + $0x18] sm:$0xff]
    %803 = vmatprep.subr.mxu0 0.0
    %804 = vmatpush1.msra.mxu0 %v769
    %805 = vmatprep.subr.mxu0 0.0
    %806 = vmatpush1.msra.mxu0 %v770
    %807 = vmatprep.subr.mxu0 0.0
    %808 = vmatpush1.msra.mxu0 %v771
    %809 = vmatprep.subr.mxu0 0.0
    %810 = vmatpush1.msra.mxu0 %v772
    %811 = vmatprep.subr.mxu0 0.0
    %812 = vmatpush1.msra.mxu0 %v773
    %813 = vmatprep.subr.mxu0 0.0
    %814 = vmatpush1.msra.mxu0 %v774
    %815 = vmatprep.subr.mxu0 0.0
    %816 = vmatpush1.msra.mxu0 %v775
    %817 = vmatprep.subr.mxu0 0.0
    %818 = vmatpush1.msra.mxu0 %v776
    %819 = vmatprep.subr.mxu0 0.0
    %820 = vmatpush1.msra.mxu0 %v777
    %821 = vmatprep.subr.mxu0 0.0
    %822 = vmatpush1.msra.mxu0 %v778
    %823 = vmatprep.subr.mxu0 0.0
    %824 = vmatpush1.msra.mxu0 %v779
    %825 = vmatprep.subr.mxu0 0.0
    %826 = vmatpush1.msra.mxu0 %v780
    %827 = vmatprep.subr.mxu0 0.0
    %828 = vmatpush1.msra.mxu0 %v781
    %829 = vmatprep.subr.mxu0 0.0
    %830 = vmatpush1.msra.mxu0 %v782
    %831 = vmatprep.subr.mxu0 0.0
    %832 = vmatpush1.msra.mxu0 %v783
    %833 = vmatprep.subr.mxu0 0.0
    %834 = vmatpush1.msra.mxu0 %v784
    %835 = vmatprep.subr.mxu0 0.0
    %836 = vmatpush1.msra.mxu0 %v785
    %837 = vmatprep.subr.mxu0 0.0
    %838 = vmatpush1.msra.mxu0 %v786
    %839 = vmatprep.subr.mxu0 0.0
    %840 = vmatpush1.msra.mxu0 %v787
    %841 = vmatprep.subr.mxu0 0.0
    %842 = vmatpush1.msra.mxu0 %v788
    %843 = vmatprep.subr.mxu0 0.0
    %844 = vmatpush1.msra.mxu0 %v789
    %845 = vmatprep.subr.mxu0 0.0
    %846 = vmatpush1.msra.mxu0 %v790
    %847 = vmatprep.subr.mxu0 0.0
    %848 = vmatpush1.msra.mxu0 %v791
    %849 = vmatprep.subr.mxu0 0.0
    %850 = vmatpush1.msra.mxu0 %v792
    %851 = vmatprep.subr.mxu0 0.0
    %852 = vmatpush1.msra.mxu0 %v793
    %853 = vmatprep.subr.mxu0 0.0
    %854 = vmatpush1.msra.mxu0 %v794
    %855 = vmatprep.subr.mxu0 0.0
    %856 = vmatpush1.msra.mxu0 %v795
    %857 = vmatprep.subr.mxu0 0.0
    %858 = vmatpush1.msra.mxu0 %v796
    %859 = vmatprep.subr.mxu0 0.0
    %860 = vmatpush1.msra.mxu0 %v797
    %861 = vmatprep.subr.mxu0 0.0
    %862 = vmatpush1.msra.mxu0 %v798
    %863 = vmatprep.subr.mxu0 0.0
    %864 = vmatpush1.msra.mxu0 %v799
    %865 = vmatprep.subr.mxu0 0.0
    %866 = vmatpush1.msra.mxu0 %v800
    %867 = vmatprep.mubr.f32.mxu0 %v765
    %868 = vmatmul.mubr.f32.gmra.mrb[0].mxu0 0.0
    %v869 = vpop.f32.mrb[0].mxu0
    %v870 = vpop.f32.mrb[0].mxu0
    %871 = vmatprep.mubr.f32.mxu0 %v766
    %872 = vmatmul.mubr.f32.gmra.mrb[0].mxu0 0.0
    %v873 = vpop.f32.mrb[0].mxu0
    %v874 = vpop.f32.mrb[0].mxu0
    %875 = vmatprep.mubr.f32.mxu0 %v767
    %876 = vmatmul.mubr.f32.gmra.mrb[0].mxu0 %v765
    %v877 = vpop.f32.mrb[0].mxu0
    %v878 = vpop.f32.mrb[0].mxu0
    %879 = vmatprep.mubr.f32.mxu0 %v768
    %880 = vmatmul.mubr.f32.gmra.mrb[0].mxu0 %v766
    %v881 = vpop.f32.mrb[0].mxu0
    %v882 = vadd.f32 %v802, %v881
    %v883 = vpop.f32.mrb[0].mxu0
    %884 = vdwg.mxu0
    %v885 = vtanh.pop %v882
    %s886 = scalar_lea.vmem [#allocation9], 320
    %v887 = vld [vmem:[%s886 + $0x18] sm:$0xff]
    %v888 = vmul.f32 %v885, %v887
    %s889 = scalar_lea.vmem [#allocation9], 352
    %v890 = vld [vmem:[%s889 + $0x18] sm:$0xff]
    %v891 = vadd.f32 %v888, %v890
    %v892 = vadd.f32 %v891, %v624
    %v893 = vtanh.pop %v892
    %v894 = vmax.f32 %v893, 0.0
    %v895 = vld [vmem:[%s8] sm:$0xff]
    %v896 = vld [vmem:[%s8 + $0x8] sm:$0xff]
    %v897 = vld [vmem:[%s8 + $0x10] sm:$0xff]
    %v898 = vld [vmem:[%s8 + $0x18] sm:$0xff]
    %v899 = vld [vmem:[%s8 + $0x20] sm:$0xff]
    %v900 = vld [vmem:[%s8 + $0x28] sm:$0xff]
    %v901 = vld [vmem:[%s8 + $0x30] sm:$0xff]
    %v902 = vld [vmem:[%s8 + $0x38] sm:$0xff]
    %v903 = vld [vmem:[%s8 + $0x40] sm:$0xff]
    %v904 = vld [vmem:[%s8 + $0x48] sm:$0xff]
    %v905 = vld [vmem:[%s8 + $0x50] sm:$0xff]
    %v906 = vld [vmem:[%s8 + $0x58] sm:$0xff]
    %v907 = vld [vmem:[%s8 + $0x60] sm:$0xff]
    %v908 = vld [vmem:[%s8 + $0x68] sm:$0xff]
    %v909 = vld [vmem:[%s8 + $0x70] sm:$0xff]
    %v910 = vld [vmem:[%s8 + $0x78] sm:$0xff]
    %v911 = vld [vmem:[%s9] sm:$0xff]
    %912 = vmatprep.subr.mxu0 0.0
    %913 = vmatpush1.msra.mxu0 %v895
    %914 = vmatprep.subr.mxu0 0.0
    %915 = vmatpush1.msra.mxu0 %v896
    %916 = vmatprep.subr.mxu0 0.0
    %917 = vmatpush1.msra.mxu0 %v897
    %918 = vmatprep.subr.mxu0 0.0
    %919 = vmatpush1.msra.mxu0 %v898
    %920 = vmatprep.subr.mxu0 0.0
    %921 = vmatpush1.msra.mxu0 %v899
    %922 = vmatprep.subr.mxu0 0.0
    %923 = vmatpush1.msra.mxu0 %v900
    %924 = vmatprep.subr.mxu0 0.0
    %925 = vmatpush1.msra.mxu0 %v901
    %926 = vmatprep.subr.mxu0 0.0
    %927 = vmatpush1.msra.mxu0 %v902
    %928 = vmatprep.subr.mxu0 0.0
    %929 = vmatpush1.msra.mxu0 %v903
    %930 = vmatprep.subr.mxu0 0.0
    %931 = vmatpush1.msra.mxu0 %v904
    %932 = vmatprep.subr.mxu0 0.0
    %933 = vmatpush1.msra.mxu0 %v905
    %934 = vmatprep.subr.mxu0 0.0
    %935 = vmatpush1.msra.mxu0 %v906
    %936 = vmatprep.subr.mxu0 0.0
    %937 = vmatpush1.msra.mxu0 %v907
    %938 = vmatprep.subr.mxu0 0.0
    %939 = vmatpush1.msra.mxu0 %v908
    %940 = vmatprep.subr.mxu0 0.0
    %941 = vmatpush1.msra.mxu0 %v909
    %942 = vmatprep.subr.mxu0 0.0
    %943 = vmatpush1.msra.mxu0 %v910
    %944 = vmatprep.subr.mxu0 0.0
    %945 = vmatpush1.msra.mxu0 0.0
    %946 = vmatprep.subr.mxu0 0.0
    %947 = vmatpush1.msra.mxu0 0.0
    %948 = vmatprep.subr.mxu0 0.0
    %949 = vmatpush1.msra.mxu0 0.0
    %950 = vmatprep.subr.mxu0 0.0
    %951 = vmatpush1.msra.mxu0 0.0
    %952 = vmatprep.subr.mxu0 0.0
    %953 = vmatpush1.msra.mxu0 0.0
    %954 = vmatprep.subr.mxu0 0.0
    %955 = vmatpush1.msra.mxu0 0.0
    %956 = vmatprep.subr.mxu0 0.0
    %957 = vmatpush1.msra.mxu0 0.0
    %958 = vmatprep.subr.mxu0 0.0
    %959 = vmatpush1.msra.mxu0 0.0
    %960 = vmatprep.subr.mxu0 0.0
    %961 = vmatpush1.msra.mxu0 0.0
    %962 = vmatprep.subr.mxu0 0.0
    %963 = vmatpush1.msra.mxu0 0.0
    %964 = vmatprep.subr.mxu0 0.0
    %965 = vmatpush1.msra.mxu0 0.0
    %966 = vmatprep.subr.mxu0 0.0
    %967 = vmatpush1.msra.mxu0 0.0
    %968 = vmatprep.subr.mxu0 0.0
    %969 = vmatpush1.msra.mxu0 0.0
    %970 = vmatprep.subr.mxu0 0.0
    %971 = vmatpush1.msra.mxu0 0.0
    %972 = vmatprep.subr.mxu0 0.0
    %973 = vmatpush1.msra.mxu0 0.0
    %974 = vmatprep.subr.mxu0 0.0
    %975 = vmatpush1.msra.mxu0 0.0
    %976 = vmatprep.mubr.f32.mxu0 0.0
    %977 = vmatmul.mubr.f32.gmra.mrb[0].mxu0 %v894
    %v978 = vpop.f32.mrb[0].mxu0
    %v979 = vadd.f32 %v911, %v978
    %v980 = vpop.f32.mrb[0].mxu0
    %981 = vdwg.mxu0
    %vm982 = vcmask 15360
    %983 = vst.msk [vmem:[%s10] sm:$0xff] %vm982, %v979
    // Predicated region
    $region62: #{tpu_custom_call.1} parent=1 // pred_check
      _
    $region63: #{tpu_custom_call.1} parent=1 // pred_check_branch
      %985 = sbr.rel (0) target = $region65
    $region64: #{tpu_custom_call.1} parent=1 // pred_region
      _
    $region65: #{tpu_custom_call.1} parent=1 // pred_fallthru
      _
    // Predicated region
    $region66: #{tpu_custom_call.1} parent=1 // pred_check
      _
    $region67: #{tpu_custom_call.1} parent=1 // pred_check_branch
      %987 = sbr.rel (0) target = $region69
    $region68: #{tpu_custom_call.1} parent=1 // pred_region
      _
    $region69: #{tpu_custom_call.1} parent=1 // pred_fallthru
      _
    %988 = vsyncpa [#allocation3], 1
    %989 = vsyncpa [#allocation5], 1
    %990 = vsyncpa [#allocation8], 1

</llo_original>
